<compile_context>
chip_gen: v5e
topology: v5e:2x2
jax: 0.10.0
libtpu: 0.0.40
codegen_flags: <defaults>
</compile_context>

<pallas_src>
import numpy as np
import jax
import jax.numpy as jnp
from jax import lax
from jax.experimental import pallas as pl
from jax.experimental.pallas import tpu as pltpu


# ----------------------------------------------------------------------------
# Host-side construction of h (mirrors AngularPropagation.__init__).
# ----------------------------------------------------------------------------
def _make_h(distance, n_padd, pixel_pitch, lambd, size):
    com_pitch = 2 * n_padd + size
    dx = pixel_pitch
    distance_nd = distance / dx
    lambda_nd = lambd / dx
    k_nd = 2.0 * np.pi / lambda_nd
    fx = np.linspace(-com_pitch / 2 + 1, com_pitch / 2, com_pitch, dtype=np.float64)
    FX, FY = np.meshgrid(fx, fx, indexing="ij")
    deter = 1.0 - (lambda_nd ** 2) / (com_pitch ** 2) * (FX ** 2 + FY ** 2)
    mask = deter < 0
    deter = np.clip(deter, 0.0, None)
    h = np.exp(1j * k_nd * distance_nd * np.sqrt(deter))
    h[mask] = 0.0
    h = np.fft.fftshift(h)
    return h.astype(np.complex64), com_pitch


# ----------------------------------------------------------------------------
# Host-side composite operator (float64 build, cast to f32).
# ----------------------------------------------------------------------------
def _composite_block_operator(h, n):
    """Real (2*N^2, 2*N^2) matrix B such that, for re/im-interleaved row
    vectors x_int (row-major pixel order), x_int @ B implements
    ifft2(fft2(x) * h) in the same interleaved layout."""
    nsq = n * n
    idx = np.arange(n)
    w = np.exp(-2j * np.pi * np.outer(idx, idx) / n)           # symmetric DFT matrix
    ww = np.kron(w, w)                                         # fft2 on row-major vec
    h_flat = np.asarray(h).astype(np.complex128).reshape(-1)
    a = (np.conj(ww) @ (h_flat[:, None] * ww)) / float(nsq)    # ifft2 . diag(h) . fft2
    m = a.T                                                    # row-vector form
    mr, mi = np.real(m), np.imag(m)
    bmat = np.zeros((2 * nsq, 2 * nsq), dtype=np.float64)
    bmat[0::2, 0::2] = mr
    bmat[0::2, 1::2] = mi
    bmat[1::2, 0::2] = -mi
    bmat[1::2, 1::2] = mr
    return bmat.astype(np.float32)


_OP_CACHE = {}


def _cached_operator(h):
    """Build + upload the operator once per distinct (h, N)."""
    h_np = np.asarray(h)
    n = h_np.shape[0]
    key = (h_np.tobytes(), n)
    op = _OP_CACHE.get(key)
    if op is None:
        op = jnp.asarray(_composite_block_operator(h_np, n))
        _OP_CACHE[key] = op
    return op


# ----------------------------------------------------------------------------
# Pallas kernel: one (bm, 2N^2) @ (2N^2, 2N^2) f32 MXU matmul per grid step.
# ----------------------------------------------------------------------------
def _angular_prop_kernel(m_ref, x_ref, z_ref):
    z_ref[...] = jnp.dot(x_ref[...], m_ref[...],
                         preferred_element_type=jnp.float32)


def _round_up(x, m):
    return ((x + m - 1) // m) * m


def _forward(x, m_block):
    """x: complex (B, C, N, N); m_block: f32 (2*N^2, 2*N^2)."""
    b, c, n, n2 = x.shape
    nb = b * c
    nsq = n * n
    k2 = 2 * nsq

    # Re/Im-interleaved, lane-dense activation slab: (nb, 2*N^2).
    xf = jnp.stack([jnp.real(x), jnp.imag(x)], axis=-1).astype(jnp.float32)
    xf = xf.reshape(nb, k2)

    # Row tiling: single step for small batches, >=2 steps (v7x megacore) for
    # mid-size ones, cap bm at 1024 (fits v5e's 16 MiB default scoped VMEM).
    nb8 = _round_up(nb, 8)
    if nb8 <= 512:
        bm = nb8
    elif nb8 <= 2048:
        bm = _round_up((nb8 + 1) // 2, 8)
    else:
        bm = 1024
    nb_p = _round_up(nb8, bm)
    if nb_p != nb:
        xf = jnp.pad(xf, ((0, nb_p - nb), (0, 0)))

    mat_spec = pl.BlockSpec((k2, k2), lambda i: (0, 0))   # grid-invariant, DMA'd once
    row_spec = pl.BlockSpec((bm, k2), lambda i: (i, 0))

    zf = pl.pallas_call(
        _angular_prop_kernel,
        out_shape=jax.ShapeDtypeStruct((nb_p, k2), jnp.float32),
        grid_spec=pltpu.PrefetchScalarGridSpec(
            num_scalar_prefetch=0,
            grid=(nb_p // bm,),
            in_specs=[mat_spec, row_spec],
            out_specs=row_spec,
        ),
        compiler_params=pltpu.CompilerParams(
            dimension_semantics=("parallel",)),
    )(m_block, xf)

    zf = zf[:nb].reshape(nb, nsq, 2)
    z = lax.complex(zf[..., 0], zf[..., 1])
    return z.reshape(b, c, n, n)


_forward_jit = jax.jit(_forward)


def angular_propagation(x, h):
    """Functional API: x complex64 (B, C, N, N), h complex64 (N, N)."""
    return _forward_jit(x, _cached_operator(h))


class AngularPropagation:
    """JAX/Pallas port of the PyTorch module: operator built & uploaded once."""

    def __init__(self, distance, n_padd, pixel_pitch, lambd, size):
        self.h, self.com_pitch = _make_h(distance, n_padd, pixel_pitch, lambd, size)
        self.m_block = _cached_operator(self.h)   # one-time build + H2D upload

    def __call__(self, x):
        return _forward_jit(x, self.m_block)


if __name__ == "__main__":
    # Module hyperparameters -> com_pitch = 2*n_padd + size = 16
    distance = 50e-6
    n_padd = 4
    pixel_pitch = 1e-6
    lambd = 532e-9
    size = 8

    prop = AngularPropagation(distance, n_padd, pixel_pitch, lambd, size)
    N = prop.com_pitch

    B, C = 2, 4  # x: (2, 4, 16, 16) complex64
    key = jax.random.PRNGKey(0)
    kr, ki = jax.random.split(key)
    xr = jax.random.normal(kr, (B, C, N, N), dtype=jnp.float32)
    xi = jax.random.normal(ki, (B, C, N, N), dtype=jnp.float32)
    x = (xr + 1j * xi).astype(jnp.complex64)

    out = prop(x)
    out = jax.block_until_ready(out)

    # Reference: jnp FFT path (same semantics as the PyTorch forward).
    ref = jnp.fft.ifft2(jnp.fft.fft2(x) * jnp.asarray(prop.h))
    err = float(jnp.max(jnp.abs(out - ref)))
    assert err < 1e-3, f"max abs error {err}"
    print("KERNEL_OK")
</pallas_src>

<mosaic_0001>
module attributes {stable_mosaic.version = 11 : i64} {
  func.func @_angular_prop_kernel(%arg0: i32, %arg1: memref<512x512xf32, #tpu.memory_space<vmem>>, %arg2: memref<8x512xf32, #tpu.memory_space<vmem>>, %arg3: memref<8x512xf32, #tpu.memory_space<vmem>>) attributes {dimension_semantics = [#tpu.dimension_semantics<parallel>], iteration_bounds = array<i64: 1>, scalar_prefetch = 0 : i64, scratch_operands = 0 : i64, tpu.core_type = #tpu.core_type<tc>, window_params = [{pipeline_mode = #tpu.pipeline_mode<synchronous>, transform_indices = @transform_0, window_bounds = array<i64: 512, 512>}, {transform_indices = @transform_1, window_bounds = array<i64: 8, 512>}, {transform_indices = @transform_2, window_bounds = array<i64: 8, 512>}]} {
    %c0 = arith.constant 0 : index
    %c0_0 = arith.constant 0 : index
    %0 = vector.load %arg2[%c0, %c0_0] : memref<8x512xf32, #tpu.memory_space<vmem>>, vector<8x512xf32>
    %c0_1 = arith.constant 0 : index
    %c0_2 = arith.constant 0 : index
    %1 = vector.load %arg1[%c0_1, %c0_2] : memref<512x512xf32, #tpu.memory_space<vmem>>, vector<512x512xf32>
    %cst = arith.constant dense<0.000000e+00> : vector<8x512xf32>
    %2 = tpu.matmul %0, %1, %cst {dimension_numbers = #tpu.dot_dimension_numbers<[1], [0], [0], [1], [0, 0, 1, 1], [], []>} : vector<8x512xf32>, vector<512x512xf32>, vector<8x512xf32> -> vector<8x512xf32>
    %c0_3 = arith.constant 0 : index
    %c0_4 = arith.constant 0 : index
    %3 = vector.load %arg3[%c0_3, %c0_4] : memref<8x512xf32, #tpu.memory_space<vmem>>, vector<8x512xf32>
    tpu.vector_store %arg3[%c0_3, %c0_4], %2 {strides = array<i32>} : memref<8x512xf32, #tpu.memory_space<vmem>>, vector<8x512xf32>,
    return
  }
  func.func @transform_0(%arg0: i32) -> (i32, i32) {
    %c0_i32 = arith.constant 0 : i32
    %c0_i32_0 = arith.constant 0 : i32
    %c0_i32_1 = arith.constant 0 : i32
    return %c0_i32, %c0_i32_0 : i32, i32
  }
  func.func @transform_1(%arg0: i32) -> (i32, i32) {
    %c0_i32 = arith.constant 0 : i32
    %c0_i32_0 = arith.constant 0 : i32
    return %arg0, %c0_i32 : i32, i32
  }
  func.func @transform_2(%arg0: i32) -> (i32, i32) {
    %c0_i32 = arith.constant 0 : i32
    %c0_i32_0 = arith.constant 0 : i32
    return %arg0, %c0_i32 : i32, i32
  }
}

</mosaic_0001>

<llo_original>
// kernel: custom-call
$region0: #{custom-call}
  %s0 = inlined_call_operand.hbm [shape: c64[2,4,16,16], index: 0, kind: input, shape index: {}]
  %s1 = inlined_call_operand.vmem [shape: f32[2,4,16,16], index: 1, kind: output, shape index: {}]
  $region1: #{custom-call} parent=0
    #allocation0 [shape = 's32[1]{0}', space=sflag, size = 0x4, scoped, tag = 'scoped memory for custom-call']
    %2 = vsyncpa [#allocation0], 0
    %s4 = sshll.u32 %s0, 4
    %s5 = int_to_ptr.hbm [resolvable:$true] %s4
    %s6 = sshll.u32 %s1, 4
    %s7 = int_to_ptr.vmem [resolvable:$true] %s6
    %9 = dma.hbm_to_vmem [thread:$0]  %s5, 2048, %s7, [#allocation0]
    %11 = dma.done [#allocation0], 2048
    %12 = vsyncpa [#allocation0], 1

// kernel: custom-call.1
$region0: #{custom-call.1}
  %s0 = inlined_call_operand.hbm [shape: c64[2,4,16,16], index: 0, kind: input, shape index: {}]
  %s1 = inlined_call_operand.vmem [shape: f32[2,4,16,16], index: 1, kind: output, shape index: {}]
  %s2 = scalar_lea.hbm %s0, 128
  $region1: #{custom-call.1} parent=0
    #allocation0 [shape = 's32[1]{0}', space=sflag, size = 0x4, scoped, tag = 'scoped memory for custom-call.1']
    %3 = vsyncpa [#allocation0], 0
    %s5 = sshll.u32 %s2, 4
    %s6 = int_to_ptr.hbm [resolvable:$true] %s5
    %s7 = sshll.u32 %s1, 4
    %s8 = int_to_ptr.vmem [resolvable:$true] %s7
    %10 = dma.hbm_to_vmem [thread:$0]  %s6, 2048, %s8, [#allocation0]
    %12 = dma.done [#allocation0], 2048
    %13 = vsyncpa [#allocation0], 1

// kernel: custom-call.2
$region0: #{custom-call.2}
  %s0 = inlined_call_operand.vmem [shape: f32[2,4,16,16], index: 0, kind: input, shape index: {}]
  %s1 = inlined_call_operand.vmem [shape: f32[2,4,16,16], index: 1, kind: input, shape index: {}]
  %s2 = inlined_call_operand.hbm [shape: c64[2,4,16,16], index: 2, kind: output, shape index: {}]
  %s3 = scalar_lea.hbm %s2, 128
  $region1: #{custom-call.2} parent=0
    #allocation0 [shape = 's32[1]{0}', space=sflag, size = 0x4, scoped, tag = 'scoped memory for custom-call.2']
    %4 = vsyncpa [#allocation0], 0
    %s6 = sshll.u32 %s0, 4
    %s7 = int_to_ptr.vmem [resolvable:$true] %s6
    %s8 = sshll.u32 %s2, 4
    %s9 = int_to_ptr.hbm [resolvable:$true] %s8
    %11 = dma.vmem_to_hbm [thread:$0]  %s7, 2048, %s9, [#allocation0]
    %13 = dma.done [#allocation0], 2048
    %14 = vsyncpa [#allocation0], 1
  $region2: #{custom-call.2} parent=0
    #allocation1 [shape = 's32[1]{0}', space=sflag, size = 0x4, scoped, tag = 'scoped memory for custom-call.2']
    %15 = vsyncpa [#allocation1], 0
    %s17 = sshll.u32 %s1, 4
    %s18 = int_to_ptr.vmem [resolvable:$true] %s17
    %s19 = sshll.u32 %s3, 4
    %s20 = int_to_ptr.hbm [resolvable:$true] %s19
    %22 = dma.vmem_to_hbm [thread:$0]  %s18, 2048, %s20, [#allocation1]
    %24 = dma.done [#allocation1], 2048
    %25 = vsyncpa [#allocation1], 1

// kernel: _forward.1
$region0: #{_forward.1}
  #allocation0 [shape = 'u32[]', space=smem, size = 0x4, offset = 0x4, fixed_abs, tag = 'smem constant byte address 0x4 - core index']
  #allocation1 [shape = 'u32[72,128]{1,0:T(1,128)}', space=vmem, size = 0x9000, scoped, tag = 'internal scratch']
  %s0 = inlined_call_operand.vmem [shape: f32[512,512], index: 0, kind: input, shape index: {}]
  %s1 = inlined_call_operand.vmem [shape: f32[8,512], index: 1, kind: input, shape index: {}]
  %s2 = inlined_call_operand.vmem [shape: f32[8,512], index: 2, kind: output, shape index: {}]
  %s3 = sld [smem:[#allocation0]]
  $region18: #{_forward.1} parent=0
    _
  %s5 = ssub.s32 1, %s3
  %s6 = scalar_select 0, %s5, %s3
  // Predicated region
  $region2: #{_forward.1} parent=0 // pred_check
    _
  $region3: #{_forward.1} parent=0 // pred_check_branch
    %8 = sbr.rel (0) target = $region5
  $region4: #{_forward.1} parent=0 // pred_region
    _
  $region5: #{_forward.1} parent=0 // pred_fallthru
    _
  // Predicated region
  $region6: #{_forward.1} parent=0 // pred_check
    _
  $region7: #{_forward.1} parent=0 // pred_check_branch
    %10 = sbr.rel (0) target = $region9
  $region8: #{_forward.1} parent=0 // pred_region
    _
  $region9: #{_forward.1} parent=0 // pred_fallthru
    _
  %v11 = vld [vmem:[%s1] sm:$0xff]
  %v12 = vld [vmem:[%s1 + $0x8] sm:$0xff]
  %v13 = vld [vmem:[%s1 + $0x10] sm:$0xff]
  %v14 = vld [vmem:[%s1 + $0x18] sm:$0xff]
  %v15 = vld [vmem:[%s0] sm:$0xff]
  %v16 = vld [vmem:[%s0 + $0x8] sm:$0xff]
  %v17 = vld [vmem:[%s0 + $0x10] sm:$0xff]
  %v18 = vld [vmem:[%s0 + $0x18] sm:$0xff]
  %v19 = vld [vmem:[%s0 + $0x20] sm:$0xff]
  %v20 = vld [vmem:[%s0 + $0x28] sm:$0xff]
  %v21 = vld [vmem:[%s0 + $0x30] sm:$0xff]
  %v22 = vld [vmem:[%s0 + $0x38] sm:$0xff]
  %v23 = vld [vmem:[%s0 + $0x40] sm:$0xff]
  %v24 = vld [vmem:[%s0 + $0x48] sm:$0xff]
  %v25 = vld [vmem:[%s0 + $0x50] sm:$0xff]
  %v26 = vld [vmem:[%s0 + $0x58] sm:$0xff]
  %v27 = vld [vmem:[%s0 + $0x60] sm:$0xff]
  %v28 = vld [vmem:[%s0 + $0x68] sm:$0xff]
  %v29 = vld [vmem:[%s0 + $0x70] sm:$0xff]
  %v30 = vld [vmem:[%s0 + $0x78] sm:$0xff]
  %v31 = vld [vmem:[%s0 + $0x80] sm:$0xff]
  %v32 = vld [vmem:[%s0 + $0x88] sm:$0xff]
  %v33 = vld [vmem:[%s0 + $0x90] sm:$0xff]
  %v34 = vld [vmem:[%s0 + $0x98] sm:$0xff]
  %v35 = vld [vmem:[%s0 + $0xa0] sm:$0xff]
  %v36 = vld [vmem:[%s0 + $0xa8] sm:$0xff]
  %v37 = vld [vmem:[%s0 + $0xb0] sm:$0xff]
  %v38 = vld [vmem:[%s0 + $0xb8] sm:$0xff]
  %v39 = vld [vmem:[%s0 + $0xc0] sm:$0xff]
  %v40 = vld [vmem:[%s0 + $0xc8] sm:$0xff]
  %v41 = vld [vmem:[%s0 + $0xd0] sm:$0xff]
  %v42 = vld [vmem:[%s0 + $0xd8] sm:$0xff]
  %v43 = vld [vmem:[%s0 + $0xe0] sm:$0xff]
  %v44 = vld [vmem:[%s0 + $0xe8] sm:$0xff]
  %v45 = vld [vmem:[%s0 + $0xf0] sm:$0xff]
  %v46 = vld [vmem:[%s0 + $0xf8] sm:$0xff]
  %v47 = vld [vmem:[%s0 + $0x100] sm:$0xff]
  %v48 = vld [vmem:[%s0 + $0x108] sm:$0xff]
  %v49 = vld [vmem:[%s0 + $0x110] sm:$0xff]
  %v50 = vld [vmem:[%s0 + $0x118] sm:$0xff]
  %v51 = vld [vmem:[%s0 + $0x120] sm:$0xff]
  %v52 = vld [vmem:[%s0 + $0x128] sm:$0xff]
  %v53 = vld [vmem:[%s0 + $0x130] sm:$0xff]
  %v54 = vld [vmem:[%s0 + $0x138] sm:$0xff]
  %v55 = vld [vmem:[%s0 + $0x140] sm:$0xff]
  %v56 = vld [vmem:[%s0 + $0x148] sm:$0xff]
  %v57 = vld [vmem:[%s0 + $0x150] sm:$0xff]
  %v58 = vld [vmem:[%s0 + $0x158] sm:$0xff]
  %v59 = vld [vmem:[%s0 + $0x160] sm:$0xff]
  %v60 = vld [vmem:[%s0 + $0x168] sm:$0xff]
  %v61 = vld [vmem:[%s0 + $0x170] sm:$0xff]
  %v62 = vld [vmem:[%s0 + $0x178] sm:$0xff]
  %v63 = vld [vmem:[%s0 + $0x180] sm:$0xff]
  %v64 = vld [vmem:[%s0 + $0x188] sm:$0xff]
  %v65 = vld [vmem:[%s0 + $0x190] sm:$0xff]
  %v66 = vld [vmem:[%s0 + $0x198] sm:$0xff]
  %v67 = vld [vmem:[%s0 + $0x1a0] sm:$0xff]
  %v68 = vld [vmem:[%s0 + $0x1a8] sm:$0xff]
  %v69 = vld [vmem:[%s0 + $0x1b0] sm:$0xff]
  %v70 = vld [vmem:[%s0 + $0x1b8] sm:$0xff]
  %v71 = vld [vmem:[%s0 + $0x1c0] sm:$0xff]
  %v72 = vld [vmem:[%s0 + $0x1c8] sm:$0xff]
  %v73 = vld [vmem:[%s0 + $0x1d0] sm:$0xff]
  %v74 = vld [vmem:[%s0 + $0x1d8] sm:$0xff]
  %v75 = vld [vmem:[%s0 + $0x1e0] sm:$0xff]
  %v76 = vld [vmem:[%s0 + $0x1e8] sm:$0xff]
  %v77 = vld [vmem:[%s0 + $0x1f0] sm:$0xff]
  %v78 = vld [vmem:[%s0 + $0x1f8] sm:$0xff]
  %v79 = vld [vmem:[%s0 + $0x200] sm:$0xff]
  %v80 = vld [vmem:[%s0 + $0x208] sm:$0xff]
  %v81 = vld [vmem:[%s0 + $0x210] sm:$0xff]
  %v82 = vld [vmem:[%s0 + $0x218] sm:$0xff]
  %v83 = vld [vmem:[%s0 + $0x220] sm:$0xff]
  %v84 = vld [vmem:[%s0 + $0x228] sm:$0xff]
  %v85 = vld [vmem:[%s0 + $0x230] sm:$0xff]
  %v86 = vld [vmem:[%s0 + $0x238] sm:$0xff]
  %v87 = vld [vmem:[%s0 + $0x240] sm:$0xff]
  %v88 = vld [vmem:[%s0 + $0x248] sm:$0xff]
  %v89 = vld [vmem:[%s0 + $0x250] sm:$0xff]
  %v90 = vld [vmem:[%s0 + $0x258] sm:$0xff]
  %v91 = vld [vmem:[%s0 + $0x260] sm:$0xff]
  %v92 = vld [vmem:[%s0 + $0x268] sm:$0xff]
  %v93 = vld [vmem:[%s0 + $0x270] sm:$0xff]
  %v94 = vld [vmem:[%s0 + $0x278] sm:$0xff]
  %v95 = vld [vmem:[%s0 + $0x280] sm:$0xff]
  %v96 = vld [vmem:[%s0 + $0x288] sm:$0xff]
  %v97 = vld [vmem:[%s0 + $0x290] sm:$0xff]
  %v98 = vld [vmem:[%s0 + $0x298] sm:$0xff]
  %v99 = vld [vmem:[%s0 + $0x2a0] sm:$0xff]
  %v100 = vld [vmem:[%s0 + $0x2a8] sm:$0xff]
  %v101 = vld [vmem:[%s0 + $0x2b0] sm:$0xff]
  %v102 = vld [vmem:[%s0 + $0x2b8] sm:$0xff]
  %v103 = vld [vmem:[%s0 + $0x2c0] sm:$0xff]
  %v104 = vld [vmem:[%s0 + $0x2c8] sm:$0xff]
  %v105 = vld [vmem:[%s0 + $0x2d0] sm:$0xff]
  %v106 = vld [vmem:[%s0 + $0x2d8] sm:$0xff]
  %v107 = vld [vmem:[%s0 + $0x2e0] sm:$0xff]
  %v108 = vld [vmem:[%s0 + $0x2e8] sm:$0xff]
  %v109 = vld [vmem:[%s0 + $0x2f0] sm:$0xff]
  %v110 = vld [vmem:[%s0 + $0x2f8] sm:$0xff]
  %v111 = vld [vmem:[%s0 + $0x300] sm:$0xff]
  %v112 = vld [vmem:[%s0 + $0x308] sm:$0xff]
  %v113 = vld [vmem:[%s0 + $0x310] sm:$0xff]
  %v114 = vld [vmem:[%s0 + $0x318] sm:$0xff]
  %v115 = vld [vmem:[%s0 + $0x320] sm:$0xff]
  %v116 = vld [vmem:[%s0 + $0x328] sm:$0xff]
  %v117 = vld [vmem:[%s0 + $0x330] sm:$0xff]
  %v118 = vld [vmem:[%s0 + $0x338] sm:$0xff]
  %v119 = vld [vmem:[%s0 + $0x340] sm:$0xff]
  %v120 = vld [vmem:[%s0 + $0x348] sm:$0xff]
  %v121 = vld [vmem:[%s0 + $0x350] sm:$0xff]
  %v122 = vld [vmem:[%s0 + $0x358] sm:$0xff]
  %v123 = vld [vmem:[%s0 + $0x360] sm:$0xff]
  %v124 = vld [vmem:[%s0 + $0x368] sm:$0xff]
  %v125 = vld [vmem:[%s0 + $0x370] sm:$0xff]
  %v126 = vld [vmem:[%s0 + $0x378] sm:$0xff]
  %v127 = vld [vmem:[%s0 + $0x380] sm:$0xff]
  %v128 = vld [vmem:[%s0 + $0x388] sm:$0xff]
  %v129 = vld [vmem:[%s0 + $0x390] sm:$0xff]
  %v130 = vld [vmem:[%s0 + $0x398] sm:$0xff]
  %v131 = vld [vmem:[%s0 + $0x3a0] sm:$0xff]
  %v132 = vld [vmem:[%s0 + $0x3a8] sm:$0xff]
  %v133 = vld [vmem:[%s0 + $0x3b0] sm:$0xff]
  %v134 = vld [vmem:[%s0 + $0x3b8] sm:$0xff]
  %v135 = vld [vmem:[%s0 + $0x3c0] sm:$0xff]
  %v136 = vld [vmem:[%s0 + $0x3c8] sm:$0xff]
  %v137 = vld [vmem:[%s0 + $0x3d0] sm:$0xff]
  %v138 = vld [vmem:[%s0 + $0x3d8] sm:$0xff]
  %v139 = vld [vmem:[%s0 + $0x3e0] sm:$0xff]
  %v140 = vld [vmem:[%s0 + $0x3e8] sm:$0xff]
  %v141 = vld [vmem:[%s0 + $0x3f0] sm:$0xff]
  %v142 = vld [vmem:[%s0 + $0x3f8] sm:$0xff]
  %v143 = vld [vmem:[%s0 + $0x400] sm:$0xff]
  %v144 = vld [vmem:[%s0 + $0x408] sm:$0xff]
  %v145 = vld [vmem:[%s0 + $0x410] sm:$0xff]
  %v146 = vld [vmem:[%s0 + $0x418] sm:$0xff]
  %v147 = vld [vmem:[%s0 + $0x420] sm:$0xff]
  %v148 = vld [vmem:[%s0 + $0x428] sm:$0xff]
  %v149 = vld [vmem:[%s0 + $0x430] sm:$0xff]
  %v150 = vld [vmem:[%s0 + $0x438] sm:$0xff]
  %v151 = vld [vmem:[%s0 + $0x440] sm:$0xff]
  %v152 = vld [vmem:[%s0 + $0x448] sm:$0xff]
  %v153 = vld [vmem:[%s0 + $0x450] sm:$0xff]
  %v154 = vld [vmem:[%s0 + $0x458] sm:$0xff]
  %v155 = vld [vmem:[%s0 + $0x460] sm:$0xff]
  %v156 = vld [vmem:[%s0 + $0x468] sm:$0xff]
  %v157 = vld [vmem:[%s0 + $0x470] sm:$0xff]
  %v158 = vld [vmem:[%s0 + $0x478] sm:$0xff]
  %v159 = vld [vmem:[%s0 + $0x480] sm:$0xff]
  %v160 = vld [vmem:[%s0 + $0x488] sm:$0xff]
  %v161 = vld [vmem:[%s0 + $0x490] sm:$0xff]
  %v162 = vld [vmem:[%s0 + $0x498] sm:$0xff]
  %v163 = vld [vmem:[%s0 + $0x4a0] sm:$0xff]
  %v164 = vld [vmem:[%s0 + $0x4a8] sm:$0xff]
  %v165 = vld [vmem:[%s0 + $0x4b0] sm:$0xff]
  %v166 = vld [vmem:[%s0 + $0x4b8] sm:$0xff]
  %v167 = vld [vmem:[%s0 + $0x4c0] sm:$0xff]
  %v168 = vld [vmem:[%s0 + $0x4c8] sm:$0xff]
  %v169 = vld [vmem:[%s0 + $0x4d0] sm:$0xff]
  %v170 = vld [vmem:[%s0 + $0x4d8] sm:$0xff]
  %v171 = vld [vmem:[%s0 + $0x4e0] sm:$0xff]
  %v172 = vld [vmem:[%s0 + $0x4e8] sm:$0xff]
  %v173 = vld [vmem:[%s0 + $0x4f0] sm:$0xff]
  %v174 = vld [vmem:[%s0 + $0x4f8] sm:$0xff]
  %v175 = vld [vmem:[%s0 + $0x500] sm:$0xff]
  %v176 = vld [vmem:[%s0 + $0x508] sm:$0xff]
  %v177 = vld [vmem:[%s0 + $0x510] sm:$0xff]
  %v178 = vld [vmem:[%s0 + $0x518] sm:$0xff]
  %v179 = vld [vmem:[%s0 + $0x520] sm:$0xff]
  %v180 = vld [vmem:[%s0 + $0x528] sm:$0xff]
  %v181 = vld [vmem:[%s0 + $0x530] sm:$0xff]
  %v182 = vld [vmem:[%s0 + $0x538] sm:$0xff]
  %v183 = vld [vmem:[%s0 + $0x540] sm:$0xff]
  %v184 = vld [vmem:[%s0 + $0x548] sm:$0xff]
  %v185 = vld [vmem:[%s0 + $0x550] sm:$0xff]
  %v186 = vld [vmem:[%s0 + $0x558] sm:$0xff]
  %v187 = vld [vmem:[%s0 + $0x560] sm:$0xff]
  %v188 = vld [vmem:[%s0 + $0x568] sm:$0xff]
  %v189 = vld [vmem:[%s0 + $0x570] sm:$0xff]
  %v190 = vld [vmem:[%s0 + $0x578] sm:$0xff]
  %v191 = vld [vmem:[%s0 + $0x580] sm:$0xff]
  %v192 = vld [vmem:[%s0 + $0x588] sm:$0xff]
  %v193 = vld [vmem:[%s0 + $0x590] sm:$0xff]
  %v194 = vld [vmem:[%s0 + $0x598] sm:$0xff]
  %v195 = vld [vmem:[%s0 + $0x5a0] sm:$0xff]
  %v196 = vld [vmem:[%s0 + $0x5a8] sm:$0xff]
  %v197 = vld [vmem:[%s0 + $0x5b0] sm:$0xff]
  %v198 = vld [vmem:[%s0 + $0x5b8] sm:$0xff]
  %v199 = vld [vmem:[%s0 + $0x5c0] sm:$0xff]
  %v200 = vld [vmem:[%s0 + $0x5c8] sm:$0xff]
  %v201 = vld [vmem:[%s0 + $0x5d0] sm:$0xff]
  %v202 = vld [vmem:[%s0 + $0x5d8] sm:$0xff]
  %v203 = vld [vmem:[%s0 + $0x5e0] sm:$0xff]
  %v204 = vld [vmem:[%s0 + $0x5e8] sm:$0xff]
  %v205 = vld [vmem:[%s0 + $0x5f0] sm:$0xff]
  %v206 = vld [vmem:[%s0 + $0x5f8] sm:$0xff]
  %v207 = vld [vmem:[%s0 + $0x600] sm:$0xff]
  %v208 = vld [vmem:[%s0 + $0x608] sm:$0xff]
  %v209 = vld [vmem:[%s0 + $0x610] sm:$0xff]
  %v210 = vld [vmem:[%s0 + $0x618] sm:$0xff]
  %v211 = vld [vmem:[%s0 + $0x620] sm:$0xff]
  %v212 = vld [vmem:[%s0 + $0x628] sm:$0xff]
  %v213 = vld [vmem:[%s0 + $0x630] sm:$0xff]
  %v214 = vld [vmem:[%s0 + $0x638] sm:$0xff]
  %v215 = vld [vmem:[%s0 + $0x640] sm:$0xff]
  %v216 = vld [vmem:[%s0 + $0x648] sm:$0xff]
  %v217 = vld [vmem:[%s0 + $0x650] sm:$0xff]
  %v218 = vld [vmem:[%s0 + $0x658] sm:$0xff]
  %v219 = vld [vmem:[%s0 + $0x660] sm:$0xff]
  %v220 = vld [vmem:[%s0 + $0x668] sm:$0xff]
  %v221 = vld [vmem:[%s0 + $0x670] sm:$0xff]
  %v222 = vld [vmem:[%s0 + $0x678] sm:$0xff]
  %v223 = vld [vmem:[%s0 + $0x680] sm:$0xff]
  %v224 = vld [vmem:[%s0 + $0x688] sm:$0xff]
  %v225 = vld [vmem:[%s0 + $0x690] sm:$0xff]
  %v226 = vld [vmem:[%s0 + $0x698] sm:$0xff]
  %v227 = vld [vmem:[%s0 + $0x6a0] sm:$0xff]
  %v228 = vld [vmem:[%s0 + $0x6a8] sm:$0xff]
  %v229 = vld [vmem:[%s0 + $0x6b0] sm:$0xff]
  %v230 = vld [vmem:[%s0 + $0x6b8] sm:$0xff]
  %v231 = vld [vmem:[%s0 + $0x6c0] sm:$0xff]
  %v232 = vld [vmem:[%s0 + $0x6c8] sm:$0xff]
  %v233 = vld [vmem:[%s0 + $0x6d0] sm:$0xff]
  %v234 = vld [vmem:[%s0 + $0x6d8] sm:$0xff]
  %v235 = vld [vmem:[%s0 + $0x6e0] sm:$0xff]
  %v236 = vld [vmem:[%s0 + $0x6e8] sm:$0xff]
  %v237 = vld [vmem:[%s0 + $0x6f0] sm:$0xff]
  %v238 = vld [vmem:[%s0 + $0x6f8] sm:$0xff]
  %v239 = vld [vmem:[%s0 + $0x700] sm:$0xff]
  %v240 = vld [vmem:[%s0 + $0x708] sm:$0xff]
  %v241 = vld [vmem:[%s0 + $0x710] sm:$0xff]
  %v242 = vld [vmem:[%s0 + $0x718] sm:$0xff]
  %v243 = vld [vmem:[%s0 + $0x720] sm:$0xff]
  %v244 = vld [vmem:[%s0 + $0x728] sm:$0xff]
  %v245 = vld [vmem:[%s0 + $0x730] sm:$0xff]
  %v246 = vld [vmem:[%s0 + $0x738] sm:$0xff]
  %v247 = vld [vmem:[%s0 + $0x740] sm:$0xff]
  %v248 = vld [vmem:[%s0 + $0x748] sm:$0xff]
  %v249 = vld [vmem:[%s0 + $0x750] sm:$0xff]
  %v250 = vld [vmem:[%s0 + $0x758] sm:$0xff]
  %v251 = vld [vmem:[%s0 + $0x760] sm:$0xff]
  %v252 = vld [vmem:[%s0 + $0x768] sm:$0xff]
  %v253 = vld [vmem:[%s0 + $0x770] sm:$0xff]
  %v254 = vld [vmem:[%s0 + $0x778] sm:$0xff]
  %v255 = vld [vmem:[%s0 + $0x780] sm:$0xff]
  %v256 = vld [vmem:[%s0 + $0x788] sm:$0xff]
  %v257 = vld [vmem:[%s0 + $0x790] sm:$0xff]
  %v258 = vld [vmem:[%s0 + $0x798] sm:$0xff]
  %v259 = vld [vmem:[%s0 + $0x7a0] sm:$0xff]
  %v260 = vld [vmem:[%s0 + $0x7a8] sm:$0xff]
  %v261 = vld [vmem:[%s0 + $0x7b0] sm:$0xff]
  %v262 = vld [vmem:[%s0 + $0x7b8] sm:$0xff]
  %v263 = vld [vmem:[%s0 + $0x7c0] sm:$0xff]
  %v264 = vld [vmem:[%s0 + $0x7c8] sm:$0xff]
  %v265 = vld [vmem:[%s0 + $0x7d0] sm:$0xff]
  %v266 = vld [vmem:[%s0 + $0x7d8] sm:$0xff]
  %v267 = vld [vmem:[%s0 + $0x7e0] sm:$0xff]
  %v268 = vld [vmem:[%s0 + $0x7e8] sm:$0xff]
  %v269 = vld [vmem:[%s0 + $0x7f0] sm:$0xff]
  %v270 = vld [vmem:[%s0 + $0x7f8] sm:$0xff]
  %271 = vmatpush.msra.mxu0 %v75
  %272 = vmatpush.msra.mxu0 %v71
  %273 = vmatpush.msra.mxu0 %v67
  %274 = vmatpush.msra.mxu0 %v63
  %275 = vmatpush.msra.mxu0 %v59
  %276 = vmatpush.msra.mxu0 %v55
  %277 = vmatpush.msra.mxu0 %v51
  %278 = vmatpush.msra.mxu0 %v47
  %279 = vmatpush.msra.mxu0 %v43
  %280 = vmatpush.msra.mxu0 %v39
  %281 = vmatpush.msra.mxu0 %v35
  %282 = vmatpush.msra.mxu0 %v31
  %283 = vmatpush.msra.mxu0 %v27
  %284 = vmatpush.msra.mxu0 %v23
  %285 = vmatpush.msra.mxu0 %v19
  %286 = vmatpush.msra.mxu0 %v15
  %287 = vmatmul.f32.gmra.mxu0 %v11
  %v288 = vpop.f32.mrf.mxu0
  %v289 = vadd.f32 0.0, %v288
  %290 = vdwg.mxu0
  %291 = vmatpush.msra.mxu0 %v139
  %292 = vmatpush.msra.mxu0 %v135
  %293 = vmatpush.msra.mxu0 %v131
  %294 = vmatpush.msra.mxu0 %v127
  %295 = vmatpush.msra.mxu0 %v123
  %296 = vmatpush.msra.mxu0 %v119
  %297 = vmatpush.msra.mxu0 %v115
  %298 = vmatpush.msra.mxu0 %v111
  %299 = vmatpush.msra.mxu0 %v107
  %300 = vmatpush.msra.mxu0 %v103
  %301 = vmatpush.msra.mxu0 %v99
  %302 = vmatpush.msra.mxu0 %v95
  %303 = vmatpush.msra.mxu0 %v91
  %304 = vmatpush.msra.mxu0 %v87
  %305 = vmatpush.msra.mxu0 %v83
  %306 = vmatpush.msra.mxu0 %v79
  %307 = vmatmul.f32.gmra.mxu0 %v12
  %v308 = vpop.f32.mrf.mxu0
  %v309 = vadd.f32 %v289, %v308
  %310 = vdwg.mxu0
  %311 = vmatpush.msra.mxu0 %v203
  %312 = vmatpush.msra.mxu0 %v199
  %313 = vmatpush.msra.mxu0 %v195
  %314 = vmatpush.msra.mxu0 %v191
  %315 = vmatpush.msra.mxu0 %v187
  %316 = vmatpush.msra.mxu0 %v183
  %317 = vmatpush.msra.mxu0 %v179
  %318 = vmatpush.msra.mxu0 %v175
  %319 = vmatpush.msra.mxu0 %v171
  %320 = vmatpush.msra.mxu0 %v167
  %321 = vmatpush.msra.mxu0 %v163
  %322 = vmatpush.msra.mxu0 %v159
  %323 = vmatpush.msra.mxu0 %v155
  %324 = vmatpush.msra.mxu0 %v151
  %325 = vmatpush.msra.mxu0 %v147
  %326 = vmatpush.msra.mxu0 %v143
  %327 = vmatmul.f32.gmra.mxu0 %v13
  %v328 = vpop.f32.mrf.mxu0
  %v329 = vadd.f32 %v309, %v328
  %330 = vdwg.mxu0
  %331 = vmatpush.msra.mxu0 %v267
  %332 = vmatpush.msra.mxu0 %v263
  %333 = vmatpush.msra.mxu0 %v259
  %334 = vmatpush.msra.mxu0 %v255
  %335 = vmatpush.msra.mxu0 %v251
  %336 = vmatpush.msra.mxu0 %v247
  %337 = vmatpush.msra.mxu0 %v243
  %338 = vmatpush.msra.mxu0 %v239
  %339 = vmatpush.msra.mxu0 %v235
  %340 = vmatpush.msra.mxu0 %v231
  %341 = vmatpush.msra.mxu0 %v227
  %342 = vmatpush.msra.mxu0 %v223
  %343 = vmatpush.msra.mxu0 %v219
  %344 = vmatpush.msra.mxu0 %v215
  %345 = vmatpush.msra.mxu0 %v211
  %346 = vmatpush.msra.mxu0 %v207
  %347 = vmatmul.f32.gmra.mxu0 %v14
  %v348 = vpop.f32.mrf.mxu0
  %v349 = vadd.f32 %v329, %v348
  %350 = vdwg.mxu0
  %351 = vmatpush.msra.mxu0 %v76
  %352 = vmatpush.msra.mxu0 %v72
  %353 = vmatpush.msra.mxu0 %v68
  %354 = vmatpush.msra.mxu0 %v64
  %355 = vmatpush.msra.mxu0 %v60
  %356 = vmatpush.msra.mxu0 %v56
  %357 = vmatpush.msra.mxu0 %v52
  %358 = vmatpush.msra.mxu0 %v48
  %359 = vmatpush.msra.mxu0 %v44
  %360 = vmatpush.msra.mxu0 %v40
  %361 = vmatpush.msra.mxu0 %v36
  %362 = vmatpush.msra.mxu0 %v32
  %363 = vmatpush.msra.mxu0 %v28
  %364 = vmatpush.msra.mxu0 %v24
  %365 = vmatpush.msra.mxu0 %v20
  %366 = vmatpush.msra.mxu0 %v16
  %367 = vmatmul.f32.gmra.mxu0 %v11
  %v368 = vpop.f32.mrf.mxu0
  %v369 = vadd.f32 0.0, %v368
  %370 = vdwg.mxu0
  %371 = vmatpush.msra.mxu0 %v140
  %372 = vmatpush.msra.mxu0 %v136
  %373 = vmatpush.msra.mxu0 %v132
  %374 = vmatpush.msra.mxu0 %v128
  %375 = vmatpush.msra.mxu0 %v124
  %376 = vmatpush.msra.mxu0 %v120
  %377 = vmatpush.msra.mxu0 %v116
  %378 = vmatpush.msra.mxu0 %v112
  %379 = vmatpush.msra.mxu0 %v108
  %380 = vmatpush.msra.mxu0 %v104
  %381 = vmatpush.msra.mxu0 %v100
  %382 = vmatpush.msra.mxu0 %v96
  %383 = vmatpush.msra.mxu0 %v92
  %384 = vmatpush.msra.mxu0 %v88
  %385 = vmatpush.msra.mxu0 %v84
  %386 = vmatpush.msra.mxu0 %v80
  %387 = vmatmul.f32.gmra.mxu0 %v12
  %v388 = vpop.f32.mrf.mxu0
  %v389 = vadd.f32 %v369, %v388
  %390 = vdwg.mxu0
  %391 = vmatpush.msra.mxu0 %v204
  %392 = vmatpush.msra.mxu0 %v200
  %393 = vmatpush.msra.mxu0 %v196
  %394 = vmatpush.msra.mxu0 %v192
  %395 = vmatpush.msra.mxu0 %v188
  %396 = vmatpush.msra.mxu0 %v184
  %397 = vmatpush.msra.mxu0 %v180
  %398 = vmatpush.msra.mxu0 %v176
  %399 = vmatpush.msra.mxu0 %v172
  %400 = vmatpush.msra.mxu0 %v168
  %401 = vmatpush.msra.mxu0 %v164
  %402 = vmatpush.msra.mxu0 %v160
  %403 = vmatpush.msra.mxu0 %v156
  %404 = vmatpush.msra.mxu0 %v152
  %405 = vmatpush.msra.mxu0 %v148
  %406 = vmatpush.msra.mxu0 %v144
  %407 = vmatmul.f32.gmra.mxu0 %v13
  %v408 = vpop.f32.mrf.mxu0
  %v409 = vadd.f32 %v389, %v408
  %410 = vdwg.mxu0
  %411 = vmatpush.msra.mxu0 %v268
  %412 = vmatpush.msra.mxu0 %v264
  %413 = vmatpush.msra.mxu0 %v260
  %414 = vmatpush.msra.mxu0 %v256
  %415 = vmatpush.msra.mxu0 %v252
  %416 = vmatpush.msra.mxu0 %v248
  %417 = vmatpush.msra.mxu0 %v244
  %418 = vmatpush.msra.mxu0 %v240
  %419 = vmatpush.msra.mxu0 %v236
  %420 = vmatpush.msra.mxu0 %v232
  %421 = vmatpush.msra.mxu0 %v228
  %422 = vmatpush.msra.mxu0 %v224
  %423 = vmatpush.msra.mxu0 %v220
  %424 = vmatpush.msra.mxu0 %v216
  %425 = vmatpush.msra.mxu0 %v212
  %426 = vmatpush.msra.mxu0 %v208
  %427 = vmatmul.f32.gmra.mxu0 %v14
  %v428 = vpop.f32.mrf.mxu0
  %v429 = vadd.f32 %v409, %v428
  %430 = vdwg.mxu0
  %431 = vmatpush.msra.mxu0 %v77
  %432 = vmatpush.msra.mxu0 %v73
  %433 = vmatpush.msra.mxu0 %v69
  %434 = vmatpush.msra.mxu0 %v65
  %435 = vmatpush.msra.mxu0 %v61
  %436 = vmatpush.msra.mxu0 %v57
  %437 = vmatpush.msra.mxu0 %v53
  %438 = vmatpush.msra.mxu0 %v49
  %439 = vmatpush.msra.mxu0 %v45
  %440 = vmatpush.msra.mxu0 %v41
  %441 = vmatpush.msra.mxu0 %v37
  %442 = vmatpush.msra.mxu0 %v33
  %443 = vmatpush.msra.mxu0 %v29
  %444 = vmatpush.msra.mxu0 %v25
  %445 = vmatpush.msra.mxu0 %v21
  %446 = vmatpush.msra.mxu0 %v17
  %447 = vmatmul.f32.gmra.mxu0 %v11
  %v448 = vpop.f32.mrf.mxu0
  %v449 = vadd.f32 0.0, %v448
  %450 = vdwg.mxu0
  %451 = vmatpush.msra.mxu0 %v141
  %452 = vmatpush.msra.mxu0 %v137
  %453 = vmatpush.msra.mxu0 %v133
  %454 = vmatpush.msra.mxu0 %v129
  %455 = vmatpush.msra.mxu0 %v125
  %456 = vmatpush.msra.mxu0 %v121
  %457 = vmatpush.msra.mxu0 %v117
  %458 = vmatpush.msra.mxu0 %v113
  %459 = vmatpush.msra.mxu0 %v109
  %460 = vmatpush.msra.mxu0 %v105
  %461 = vmatpush.msra.mxu0 %v101
  %462 = vmatpush.msra.mxu0 %v97
  %463 = vmatpush.msra.mxu0 %v93
  %464 = vmatpush.msra.mxu0 %v89
  %465 = vmatpush.msra.mxu0 %v85
  %466 = vmatpush.msra.mxu0 %v81
  %467 = vmatmul.f32.gmra.mxu0 %v12
  %v468 = vpop.f32.mrf.mxu0
  %v469 = vadd.f32 %v449, %v468
  %470 = vdwg.mxu0
  %471 = vmatpush.msra.mxu0 %v205
  %472 = vmatpush.msra.mxu0 %v201
  %473 = vmatpush.msra.mxu0 %v197
  %474 = vmatpush.msra.mxu0 %v193
  %475 = vmatpush.msra.mxu0 %v189
  %476 = vmatpush.msra.mxu0 %v185
  %477 = vmatpush.msra.mxu0 %v181
  %478 = vmatpush.msra.mxu0 %v177
  %479 = vmatpush.msra.mxu0 %v173
  %480 = vmatpush.msra.mxu0 %v169
  %481 = vmatpush.msra.mxu0 %v165
  %482 = vmatpush.msra.mxu0 %v161
  %483 = vmatpush.msra.mxu0 %v157
  %484 = vmatpush.msra.mxu0 %v153
  %485 = vmatpush.msra.mxu0 %v149
  %486 = vmatpush.msra.mxu0 %v145
  %487 = vmatmul.f32.gmra.mxu0 %v13
  %v488 = vpop.f32.mrf.mxu0
  %v489 = vadd.f32 %v469, %v488
  %490 = vdwg.mxu0
  %491 = vmatpush.msra.mxu0 %v269
  %492 = vmatpush.msra.mxu0 %v265
  %493 = vmatpush.msra.mxu0 %v261
  %494 = vmatpush.msra.mxu0 %v257
  %495 = vmatpush.msra.mxu0 %v253
  %496 = vmatpush.msra.mxu0 %v249
  %497 = vmatpush.msra.mxu0 %v245
  %498 = vmatpush.msra.mxu0 %v241
  %499 = vmatpush.msra.mxu0 %v237
  %500 = vmatpush.msra.mxu0 %v233
  %501 = vmatpush.msra.mxu0 %v229
  %502 = vmatpush.msra.mxu0 %v225
  %503 = vmatpush.msra.mxu0 %v221
  %504 = vmatpush.msra.mxu0 %v217
  %505 = vmatpush.msra.mxu0 %v213
  %506 = vmatpush.msra.mxu0 %v209
  %507 = vmatmul.f32.gmra.mxu0 %v14
  %v508 = vpop.f32.mrf.mxu0
  %v509 = vadd.f32 %v489, %v508
  %510 = vdwg.mxu0
  %511 = vmatpush.msra.mxu0 %v78
  %512 = vmatpush.msra.mxu0 %v74
  %513 = vmatpush.msra.mxu0 %v70
  %514 = vmatpush.msra.mxu0 %v66
  %515 = vmatpush.msra.mxu0 %v62
  %516 = vmatpush.msra.mxu0 %v58
  %517 = vmatpush.msra.mxu0 %v54
  %518 = vmatpush.msra.mxu0 %v50
  %519 = vmatpush.msra.mxu0 %v46
  %520 = vmatpush.msra.mxu0 %v42
  %521 = vmatpush.msra.mxu0 %v38
  %522 = vmatpush.msra.mxu0 %v34
  %523 = vmatpush.msra.mxu0 %v30
  %524 = vmatpush.msra.mxu0 %v26
  %525 = vmatpush.msra.mxu0 %v22
  %526 = vmatpush.msra.mxu0 %v18
  %527 = vmatmul.f32.gmra.mxu0 %v11
  %v528 = vpop.f32.mrf.mxu0
  %v529 = vadd.f32 0.0, %v528
  %530 = vdwg.mxu0
  %531 = vmatpush.msra.mxu0 %v142
  %532 = vmatpush.msra.mxu0 %v138
  %533 = vmatpush.msra.mxu0 %v134
  %534 = vmatpush.msra.mxu0 %v130
  %535 = vmatpush.msra.mxu0 %v126
  %536 = vmatpush.msra.mxu0 %v122
  %537 = vmatpush.msra.mxu0 %v118
  %538 = vmatpush.msra.mxu0 %v114
  %539 = vmatpush.msra.mxu0 %v110
  %540 = vmatpush.msra.mxu0 %v106
  %541 = vmatpush.msra.mxu0 %v102
  %542 = vmatpush.msra.mxu0 %v98
  %543 = vmatpush.msra.mxu0 %v94
  %544 = vmatpush.msra.mxu0 %v90
  %545 = vmatpush.msra.mxu0 %v86
  %546 = vmatpush.msra.mxu0 %v82
  %547 = vmatmul.f32.gmra.mxu0 %v12
  %v548 = vpop.f32.mrf.mxu0
  %v549 = vadd.f32 %v529, %v548
  %550 = vdwg.mxu0
  %551 = vmatpush.msra.mxu0 %v206
  %552 = vmatpush.msra.mxu0 %v202
  %553 = vmatpush.msra.mxu0 %v198
  %554 = vmatpush.msra.mxu0 %v194
  %555 = vmatpush.msra.mxu0 %v190
  %556 = vmatpush.msra.mxu0 %v186
  %557 = vmatpush.msra.mxu0 %v182
  %558 = vmatpush.msra.mxu0 %v178
  %559 = vmatpush.msra.mxu0 %v174
  %560 = vmatpush.msra.mxu0 %v170
  %561 = vmatpush.msra.mxu0 %v166
  %562 = vmatpush.msra.mxu0 %v162
  %563 = vmatpush.msra.mxu0 %v158
  %564 = vmatpush.msra.mxu0 %v154
  %565 = vmatpush.msra.mxu0 %v150
  %566 = vmatpush.msra.mxu0 %v146
  %567 = vmatmul.f32.gmra.mxu0 %v13
  %v568 = vpop.f32.mrf.mxu0
  %v569 = vadd.f32 %v549, %v568
  %570 = vdwg.mxu0
  %571 = vmatpush.msra.mxu0 %v270
  %572 = vmatpush.msra.mxu0 %v266
  %573 = vmatpush.msra.mxu0 %v262
  %574 = vmatpush.msra.mxu0 %v258
  %575 = vmatpush.msra.mxu0 %v254
  %576 = vmatpush.msra.mxu0 %v250
  %577 = vmatpush.msra.mxu0 %v246
  %578 = vmatpush.msra.mxu0 %v242
  %579 = vmatpush.msra.mxu0 %v238
  %580 = vmatpush.msra.mxu0 %v234
  %581 = vmatpush.msra.mxu0 %v230
  %582 = vmatpush.msra.mxu0 %v226
  %583 = vmatpush.msra.mxu0 %v222
  %584 = vmatpush.msra.mxu0 %v218
  %585 = vmatpush.msra.mxu0 %v214
  %586 = vmatpush.msra.mxu0 %v210
  %587 = vmatmul.f32.gmra.mxu0 %v14
  %v588 = vpop.f32.mrf.mxu0
  %v589 = vadd.f32 %v569, %v588
  %590 = vdwg.mxu0
  %591 = vst [vmem:[%s2] sm:$0xff] %v349
  %592 = vst [vmem:[%s2 + $0x8] sm:$0xff] %v429
  %593 = vst [vmem:[%s2 + $0x10] sm:$0xff] %v509
  %594 = vst [vmem:[%s2 + $0x18] sm:$0xff] %v589
  // Predicated region
  $region10: #{_forward.1} parent=0 // pred_check
    _
  $region11: #{_forward.1} parent=0 // pred_check_branch
    %596 = sbr.rel (0) target = $region13
  $region12: #{_forward.1} parent=0 // pred_region
    _
  $region13: #{_forward.1} parent=0 // pred_fallthru
    _
  // Predicated region
  $region14: #{_forward.1} parent=0 // pred_check
    _
  $region15: #{_forward.1} parent=0 // pred_check_branch
    %598 = sbr.rel (0) target = $region17
  $region16: #{_forward.1} parent=0 // pred_region
    _
  $region17: #{_forward.1} parent=0 // pred_fallthru
    _

</llo_original>
